<compile_context>
chip_gen: v7x
topology: tpu7x:2x2x1
jax: 0.10.0
libtpu: 0.0.40
codegen_flags: <defaults>
</compile_context>

<pallas_src>
import numpy as np
import jax
import jax.numpy as jnp
from jax.experimental import pallas as pl
from jax.experimental.pallas import tpu as pltpu

BN_EPS = 1e-5
N_CLONE = 4
N_SEG = 3
SEG_HS = (8, 6, 4)          # input heights of seg_cut_in_8 / _6 / _4
SEG_TOUT = (7, 5, 3)        # conv output heights (kernel (2,9), stride 1)
SEG_OFFS = (0, 7, 12)       # time offsets in the concatenated output (7+5+3)
T_TOTAL = 15
KPATCH = 18                 # flattened 2x9 im2col patch (kh-major)
N_GROUP = 2                 # clone-pair groups: clones {0,1} and {2,3}
CLONES_PER_GROUP = N_CLONE // N_GROUP
BRANCH_PER_GROUP = CLONES_PER_GROUP * N_SEG   # 6 branches per group
LANES_IN_G = 128            # 6*18 = 108 valid input lanes, zero-padded to 128
LANES_OUT_G = 128           # 6*F  =  96 valid output lanes, zero-padded to 128


def _fused_kernel(x_ref, wc_ref, gamma_ref, beta_ref, invn_ref, wf_ref, bf_ref,
                  o_ref):
    """One clone-pair group per grid step (grid=(2,), "parallel").

    x_ref     : (B*15, 128)     banded im2col slab for this group
    wc_ref    : (1, 128, 6*C)   block-diagonal conv weights (kh-major patches)
    gamma/beta: (1, 1, 6*C)     BatchNorm affine parameters
    invn_ref  : (1, 6*C)        1 / (B * t_out(segment)) per branch-channel
    wf_ref    : (1, 6*C, 128)   block-diagonal linear weights (zero-padded cols)
    bf_ref    : (1, 1, 128)     packed linear bias (zero-padded)
    o_ref     : (B*15, 128)     lane-dense output slab
    """
    x = x_ref[...]
    # Conv2d(1, C, (2,9)) for all 6 branches of the group as ONE matmul.
    conv = jnp.dot(x, wc_ref[0], preferred_element_type=jnp.float32)  # (B*15, 6C)

    # Training-mode BatchNorm2d, single-pass batch statistics (biased var).
    # Rows outside a branch's segment are exactly zero (zero input band, conv
    # bias dropped), so they fall out of the sums; invn holds 1/(B*t_out).
    invn = invn_ref[...]
    mean = jnp.sum(conv, axis=0, keepdims=True) * invn
    ex2 = jnp.sum(conv * conv, axis=0, keepdims=True) * invn
    var = jnp.maximum(ex2 - mean * mean, 0.0)
    scale = gamma_ref[0] * jax.lax.rsqrt(var + BN_EPS)
    shift = beta_ref[0] - mean * scale

    h = jnp.maximum(conv * scale + shift, 0.0)                 # BN + ReLU
    out = jnp.dot(h, wf_ref[0], preferred_element_type=jnp.float32) + bf_ref[0]
    o_ref[...] = jnp.maximum(out, 0.0)                         # Linear + ReLU


def _build_slab(seg8, seg6, seg4):
    """(B,4,H,9) raw segments -> (B*15, 2*128) block-banded im2col slab."""
    B = seg8.shape[0]
    segs = (seg8, seg6, seg4)
    rows = []
    for s in range(N_SEG):
        seg = segs[s]
        t = SEG_TOUT[s]
        # im2col: [row_t | row_{t+1}] (kh-major), matching the weight flatten.
        patch = jnp.concatenate([seg[:, :, :t, :], seg[:, :, 1:, :]], axis=-1)
        patch = jnp.transpose(patch, (0, 2, 1, 3))             # (B, t, 4, 18)
        lo = s * KPATCH
        hi = N_SEG * KPATCH - KPATCH - lo
        band = jnp.pad(patch, ((0, 0), (0, 0), (0, 0), (lo, hi)))   # (B,t,4,54)
        band = band.reshape(B, t, N_GROUP, BRANCH_PER_GROUP * KPATCH)
        band = jnp.pad(band, ((0, 0), (0, 0), (0, 0),
                              (0, LANES_IN_G - band.shape[-1])))     # (B,t,2,128)
        rows.append(band.reshape(B, t, N_GROUP * LANES_IN_G))
    slab = jnp.concatenate(rows, axis=1)                       # (B, 15, 256)
    return slab.reshape(B * T_TOTAL, N_GROUP * LANES_IN_G)


def local_convolution_forward(seg8, seg6, seg4, packed):
    """Mirrors Local_Convolution.forward with the module in training mode
    (BatchNorm uses biased batch statistics).  Returns (B, 4, 15, fc_out)."""
    B = seg8.shape[0]
    C = packed["gamma"].shape[-1] // BRANCH_PER_GROUP
    F = packed["wf"].shape[-1] // BRANCH_PER_GROUP
    assert BRANCH_PER_GROUP * F <= LANES_OUT_G

    slab = _build_slab(seg8, seg6, seg4)                       # (B*15, 256)

    # Per branch-channel 1/(B*t_out); identical for both groups (clone-major,
    # segment-minor band order within each group).
    invn_np = np.zeros((1, BRANCH_PER_GROUP * C), np.float32)
    for il in range(CLONES_PER_GROUP):
        for s in range(N_SEG):
            b_idx = il * N_SEG + s
            invn_np[0, b_idx * C:(b_idx + 1) * C] = 1.0 / (B * SEG_TOUT[s])
    invn = jnp.asarray(invn_np)

    # Pad linear weights/bias out to the 128-lane output band (padded lanes
    # stay exactly zero through ReLU and are dropped in the wrapper).
    pad_out = LANES_OUT_G - BRANCH_PER_GROUP * F
    wf = jnp.pad(packed["wf"], ((0, 0), (0, 0), (0, pad_out)))
    bf = jnp.pad(packed["bf"], ((0, 0), (0, 0), (0, pad_out)))

    M = B * T_TOTAL
    out_slab = pl.pallas_call(
        _fused_kernel,
        out_shape=jax.ShapeDtypeStruct((M, N_GROUP * LANES_OUT_G), jnp.float32),
        grid=(N_GROUP,),
        in_specs=[
            pl.BlockSpec((M, LANES_IN_G), lambda g: (0, g)),
            pl.BlockSpec((1, LANES_IN_G, BRANCH_PER_GROUP * C), lambda g: (g, 0, 0)),
            pl.BlockSpec((1, 1, BRANCH_PER_GROUP * C), lambda g: (g, 0, 0)),
            pl.BlockSpec((1, 1, BRANCH_PER_GROUP * C), lambda g: (g, 0, 0)),
            pl.BlockSpec((1, BRANCH_PER_GROUP * C), lambda g: (0, 0)),
            pl.BlockSpec((1, BRANCH_PER_GROUP * C, LANES_OUT_G), lambda g: (g, 0, 0)),
            pl.BlockSpec((1, 1, LANES_OUT_G), lambda g: (g, 0, 0)),
        ],
        out_specs=pl.BlockSpec((M, LANES_OUT_G), lambda g: (0, g)),
        compiler_params=pltpu.CompilerParams(dimension_semantics=("parallel",)),
    )(slab, packed["wc"], packed["gamma"], packed["beta"], invn, wf, bf)

    # Layout plumbing back to (B, 4, 15, F) in the wrapper so the kernel's
    # stores stay 128-lane dense.
    r = out_slab.reshape(B, T_TOTAL, N_GROUP, LANES_OUT_G)[..., :BRANCH_PER_GROUP * F]
    r = r.reshape(B, T_TOTAL, N_CLONE, N_SEG, F)
    parts = [r[:, SEG_OFFS[s]:SEG_OFFS[s] + SEG_TOUT[s], :, s, :]
             for s in range(N_SEG)]
    out = jnp.concatenate(parts, axis=1)                       # (B, 15, 4, F)
    return jnp.transpose(out, (0, 2, 1, 3))                    # (B, 4, 15, F)


def init_params(key, conv_out, fc_out):
    """Synthetic parameters with the torch module's per-branch shapes."""
    kc, kf, kfb, kg, kb = jax.random.split(key, 5)
    wconv = jax.random.normal(kc, (N_SEG, N_CLONE, conv_out, 2, 9), jnp.float32) * 0.1
    # NOTE: the Conv2d bias is intentionally omitted: a per-channel constant
    # added before a training-mode BatchNorm cancels exactly, so it has zero
    # effect on this forward pass.
    gamma = 1.0 + 0.1 * jax.random.normal(kg, (N_SEG, N_CLONE, conv_out), jnp.float32)
    beta = 0.1 * jax.random.normal(kb, (N_SEG, N_CLONE, conv_out), jnp.float32)
    wlin = jax.random.normal(kf, (N_SEG, N_CLONE, fc_out, conv_out), jnp.float32) * 0.1
    blin = jax.random.normal(kfb, (N_SEG, N_CLONE, fc_out), jnp.float32) * 0.1
    return dict(wconv=wconv, gamma=gamma, beta=beta, wlin=wlin, blin=blin)


def pack_params(raw):
    """Pack the 12 (segment, clone) branches into block-diagonal matrices for
    two clone-pair groups (clone-local major, segment minor within a group)."""
    wconv = np.asarray(raw["wconv"])    # (3, 4, C, 2, 9)
    wlin = np.asarray(raw["wlin"])      # (3, 4, F, C)
    blin = np.asarray(raw["blin"])      # (3, 4, F)
    gamma_r = np.asarray(raw["gamma"])  # (3, 4, C)
    beta_r = np.asarray(raw["beta"])
    C = wconv.shape[2]
    F = wlin.shape[2]
    CB = BRANCH_PER_GROUP * C
    FB = BRANCH_PER_GROUP * F
    assert BRANCH_PER_GROUP * KPATCH <= LANES_IN_G and FB <= LANES_OUT_G

    wc = np.zeros((N_GROUP, LANES_IN_G, CB), np.float32)
    wf = np.zeros((N_GROUP, CB, FB), np.float32)
    bf = np.zeros((N_GROUP, 1, FB), np.float32)
    gamma = np.zeros((N_GROUP, 1, CB), np.float32)
    beta = np.zeros((N_GROUP, 1, CB), np.float32)
    for g in range(N_GROUP):
        for il in range(CLONES_PER_GROUP):
            clone = g * CLONES_PER_GROUP + il
            for s in range(N_SEG):
                b_idx = il * N_SEG + s
                k0, c0, f0 = b_idx * KPATCH, b_idx * C, b_idx * F
                # (C, 2, 9) -> kh-major (18, C), matching the im2col patch.
                wc[g, k0:k0 + KPATCH, c0:c0 + C] = wconv[s, clone].reshape(C, KPATCH).T
                gamma[g, 0, c0:c0 + C] = gamma_r[s, clone]
                beta[g, 0, c0:c0 + C] = beta_r[s, clone]
                wf[g, c0:c0 + C, f0:f0 + F] = wlin[s, clone].T
                bf[g, 0, f0:f0 + F] = blin[s, clone]
    return dict(wc=jnp.asarray(wc), gamma=jnp.asarray(gamma),
                beta=jnp.asarray(beta), wf=jnp.asarray(wf), bf=jnp.asarray(bf))


def reference_forward(seg8, seg6, seg4, raw):
    """Pure-JAX mirror of the torch module in training mode (for validation)."""
    segs = (seg8, seg6, seg4)
    hp = jax.lax.Precision.HIGHEST
    clone_outs = []
    for i in range(N_CLONE):
        seg_outs = []
        for s in range(N_SEG):
            x = segs[s][:, i]                                  # (B, H, 9)
            t = SEG_TOUT[s]
            patch = jnp.concatenate([x[:, :t, :], x[:, 1:, :]], axis=-1)
            w = raw["wconv"][s, i].reshape(-1, KPATCH)         # (C, 18)
            conv = jnp.einsum("btk,ck->btc", patch, w, precision=hp)
            mean = jnp.mean(conv, axis=(0, 1))
            var = jnp.mean((conv - mean) ** 2, axis=(0, 1))    # biased batch var
            y = (conv - mean) * jax.lax.rsqrt(var + BN_EPS)
            y = jnp.maximum(y * raw["gamma"][s, i] + raw["beta"][s, i], 0.0)
            o = jnp.einsum("btc,fc->btf", y, raw["wlin"][s, i], precision=hp)
            seg_outs.append(jnp.maximum(o + raw["blin"][s, i], 0.0))
        clone_outs.append(jnp.concatenate(seg_outs, axis=1))   # (B, 15, F)
    return jnp.stack(clone_outs, axis=1)                       # (B, 4, 15, F)


if __name__ == "__main__":
    conv_out, fc_out = 8, 16
    B = 2
    key = jax.random.PRNGKey(0)
    k_p, k8, k6, k4 = jax.random.split(key, 4)

    raw = init_params(k_p, conv_out, fc_out)
    packed = pack_params(raw)
    seg_cut_in_8 = jax.random.normal(k8, (B, N_CLONE, 8, 9), jnp.float32)
    seg_cut_in_6 = jax.random.normal(k6, (B, N_CLONE, 6, 9), jnp.float32)
    seg_cut_in_4 = jax.random.normal(k4, (B, N_CLONE, 4, 9), jnp.float32)

    fwd = jax.jit(local_convolution_forward)
    out = fwd(seg_cut_in_8, seg_cut_in_6, seg_cut_in_4, packed)
    jax.block_until_ready(out)
    assert out.shape == (B, N_CLONE, T_TOTAL, fc_out), out.shape

    ref = reference_forward(seg_cut_in_8, seg_cut_in_6, seg_cut_in_4, raw)
    np.testing.assert_allclose(np.asarray(out), np.asarray(ref),
                               rtol=1e-2, atol=1e-2)

    # TODO(synk): torch training mode also updates BN running_mean/var as a
    # side effect; this forward-only kernel intentionally does not do that.
    # TODO(synk): at much larger batch, tile the (B*15) row dim with a blocked
    # BlockSpec (and raise vmem_limit_bytes) instead of whole-slab residency.
    print("KERNEL_OK")
</pallas_src>

<mosaic_0001>
module attributes {stable_mosaic.version = 11 : i64} {
  func.func @_fused_kernel(%arg0: i32, %arg1: memref<30x128xf32, #tpu.memory_space<vmem>>, %arg2: memref<1x128x48xf32, #tpu.memory_space<vmem>>, %arg3: memref<1x1x48xf32, #tpu.memory_space<vmem>>, %arg4: memref<1x1x48xf32, #tpu.memory_space<vmem>>, %arg5: memref<1x48xf32, #tpu.memory_space<vmem>>, %arg6: memref<1x48x128xf32, #tpu.memory_space<vmem>>, %arg7: memref<1x1x128xf32, #tpu.memory_space<vmem>>, %arg8: memref<30x128xf32, #tpu.memory_space<vmem>>) attributes {dimension_semantics = [#tpu.dimension_semantics<parallel>], iteration_bounds = array<i64: 2>, scalar_prefetch = 0 : i64, scratch_operands = 0 : i64, tpu.core_type = #tpu.core_type<tc>, window_params = [{transform_indices = @transform_0, window_bounds = array<i64: 30, 128>}, {transform_indices = @transform_1, window_bounds = array<i64: 1, 128, 48>}, {transform_indices = @transform_2, window_bounds = array<i64: 1, 1, 48>}, {transform_indices = @transform_3, window_bounds = array<i64: 1, 1, 48>}, {pipeline_mode = #tpu.pipeline_mode<synchronous>, transform_indices = @transform_4, window_bounds = array<i64: 1, 48>}, {transform_indices = @transform_5, window_bounds = array<i64: 1, 48, 128>}, {transform_indices = @transform_6, window_bounds = array<i64: 1, 1, 128>}, {transform_indices = @transform_7, window_bounds = array<i64: 30, 128>}]} {
    %c0 = arith.constant 0 : index
    %c0_0 = arith.constant 0 : index
    %0 = vector.load %arg1[%c0, %c0_0] : memref<30x128xf32, #tpu.memory_space<vmem>>, vector<30x128xf32>
    %c0_1 = arith.constant 0 : index
    %c0_2 = arith.constant 0 : index
    %c0_3 = arith.constant 0 : index
    %1 = vector.load %arg2[%c0_1, %c0_2, %c0_3] : memref<1x128x48xf32, #tpu.memory_space<vmem>>, vector<1x128x48xf32>
    %2 = vector.shape_cast %1 : vector<1x128x48xf32> to vector<128x48xf32>
    %cst = arith.constant dense<0.000000e+00> : vector<30x48xf32>
    %3 = tpu.matmul %0, %2, %cst {dimension_numbers = #tpu.dot_dimension_numbers<[1], [0], [0], [1], [0, 0, 1, 1], [], []>} : vector<30x128xf32>, vector<128x48xf32>, vector<30x48xf32> -> vector<30x48xf32>
    %c0_4 = arith.constant 0 : index
    %c0_5 = arith.constant 0 : index
    %4 = vector.load %arg5[%c0_4, %c0_5] : memref<1x48xf32, #tpu.memory_space<vmem>>, vector<1x48xf32>
    %cst_6 = arith.constant dense<0.000000e+00> : vector<48xf32>
    %5 = vector.multi_reduction <add>, %3, %cst_6 [0] : vector<30x48xf32> to vector<48xf32>
    %6 = vector.shape_cast %5 : vector<48xf32> to vector<1x48xf32>
    %7 = arith.mulf %6, %4 : vector<1x48xf32>
    %8 = arith.mulf %3, %3 : vector<30x48xf32>
    %cst_7 = arith.constant dense<0.000000e+00> : vector<48xf32>
    %9 = vector.multi_reduction <add>, %8, %cst_7 [0] : vector<30x48xf32> to vector<48xf32>
    %10 = vector.shape_cast %9 : vector<48xf32> to vector<1x48xf32>
    %11 = arith.mulf %10, %4 : vector<1x48xf32>
    %12 = arith.mulf %7, %7 : vector<1x48xf32>
    %13 = arith.subf %11, %12 : vector<1x48xf32>
    %cst_8 = arith.constant 0.000000e+00 : f32
    %14 = vector.broadcast %cst_8 : f32 to vector<1x48xf32>
    %15 = arith.maximumf %13, %14 : vector<1x48xf32>
    %c0_9 = arith.constant 0 : index
    %c0_10 = arith.constant 0 : index
    %c0_11 = arith.constant 0 : index
    %16 = vector.load %arg3[%c0_9, %c0_10, %c0_11] : memref<1x1x48xf32, #tpu.memory_space<vmem>>, vector<1x1x48xf32>
    %17 = vector.shape_cast %16 : vector<1x1x48xf32> to vector<1x48xf32>
    %cst_12 = arith.constant 9.99999974E-6 : f32
    %18 = vector.broadcast %cst_12 : f32 to vector<1x48xf32>
    %19 = arith.addf %15, %18 : vector<1x48xf32>
    %20 = math.rsqrt %19 : vector<1x48xf32>
    %21 = arith.mulf %17, %20 : vector<1x48xf32>
    %c0_13 = arith.constant 0 : index
    %c0_14 = arith.constant 0 : index
    %c0_15 = arith.constant 0 : index
    %22 = vector.load %arg4[%c0_13, %c0_14, %c0_15] : memref<1x1x48xf32, #tpu.memory_space<vmem>>, vector<1x1x48xf32>
    %23 = vector.shape_cast %22 : vector<1x1x48xf32> to vector<1x48xf32>
    %24 = arith.mulf %7, %21 : vector<1x48xf32>
    %25 = arith.subf %23, %24 : vector<1x48xf32>
    %26 = vector.broadcast %21 : vector<1x48xf32> to vector<30x48xf32>
    %27 = arith.mulf %3, %26 : vector<30x48xf32>
    %28 = vector.broadcast %25 : vector<1x48xf32> to vector<30x48xf32>
    %29 = arith.addf %27, %28 : vector<30x48xf32>
    %cst_16 = arith.constant 0.000000e+00 : f32
    %30 = vector.broadcast %cst_16 : f32 to vector<30x48xf32>
    %31 = arith.maximumf %29, %30 : vector<30x48xf32>
    %c0_17 = arith.constant 0 : index
    %c0_18 = arith.constant 0 : index
    %c0_19 = arith.constant 0 : index
    %32 = vector.load %arg6[%c0_17, %c0_18, %c0_19] : memref<1x48x128xf32, #tpu.memory_space<vmem>>, vector<1x48x128xf32>
    %33 = vector.shape_cast %32 : vector<1x48x128xf32> to vector<48x128xf32>
    %cst_20 = arith.constant dense<0.000000e+00> : vector<30x128xf32>
    %34 = tpu.matmul %31, %33, %cst_20 {dimension_numbers = #tpu.dot_dimension_numbers<[1], [0], [0], [1], [0, 0, 1, 1], [], []>} : vector<30x48xf32>, vector<48x128xf32>, vector<30x128xf32> -> vector<30x128xf32>
    %c0_21 = arith.constant 0 : index
    %c0_22 = arith.constant 0 : index
    %c0_23 = arith.constant 0 : index
    %35 = vector.load %arg7[%c0_21, %c0_22, %c0_23] : memref<1x1x128xf32, #tpu.memory_space<vmem>>, vector<1x1x128xf32>
    %36 = vector.shape_cast %35 : vector<1x1x128xf32> to vector<1x128xf32>
    %37 = vector.broadcast %36 : vector<1x128xf32> to vector<30x128xf32>
    %38 = arith.addf %34, %37 : vector<30x128xf32>
    %cst_24 = arith.constant 0.000000e+00 : f32
    %39 = vector.broadcast %cst_24 : f32 to vector<30x128xf32>
    %40 = arith.maximumf %38, %39 : vector<30x128xf32>
    %c0_25 = arith.constant 0 : index
    %c0_26 = arith.constant 0 : index
    %41 = vector.load %arg8[%c0_25, %c0_26] : memref<30x128xf32, #tpu.memory_space<vmem>>, vector<30x128xf32>
    tpu.vector_store %arg8[%c0_25, %c0_26], %40 {strides = array<i32>} : memref<30x128xf32, #tpu.memory_space<vmem>>, vector<30x128xf32>,
    return
  }
  func.func @transform_0(%arg0: i32) -> (i32, i32) {
    %c0_i32 = arith.constant 0 : i32
    %c0_i32_0 = arith.constant 0 : i32
    return %c0_i32, %arg0 : i32, i32
  }
  func.func @transform_1(%arg0: i32) -> (i32, i32, i32) {
    %c0_i32 = arith.constant 0 : i32
    %c0_i32_0 = arith.constant 0 : i32
    %c0_i32_1 = arith.constant 0 : i32
    return %arg0, %c0_i32, %c0_i32_0 : i32, i32, i32
  }
  func.func @transform_2(%arg0: i32) -> (i32, i32, i32) {
    %c0_i32 = arith.constant 0 : i32
    %c0_i32_0 = arith.constant 0 : i32
    %c0_i32_1 = arith.constant 0 : i32
    return %arg0, %c0_i32, %c0_i32_0 : i32, i32, i32
  }
  func.func @transform_3(%arg0: i32) -> (i32, i32, i32) {
    %c0_i32 = arith.constant 0 : i32
    %c0_i32_0 = arith.constant 0 : i32
    %c0_i32_1 = arith.constant 0 : i32
    return %arg0, %c0_i32, %c0_i32_0 : i32, i32, i32
  }
  func.func @transform_4(%arg0: i32) -> (i32, i32) {
    %c0_i32 = arith.constant 0 : i32
    %c0_i32_0 = arith.constant 0 : i32
    %c0_i32_1 = arith.constant 0 : i32
    return %c0_i32, %c0_i32_0 : i32, i32
  }
  func.func @transform_5(%arg0: i32) -> (i32, i32, i32) {
    %c0_i32 = arith.constant 0 : i32
    %c0_i32_0 = arith.constant 0 : i32
    %c0_i32_1 = arith.constant 0 : i32
    return %arg0, %c0_i32, %c0_i32_0 : i32, i32, i32
  }
  func.func @transform_6(%arg0: i32) -> (i32, i32, i32) {
    %c0_i32 = arith.constant 0 : i32
    %c0_i32_0 = arith.constant 0 : i32
    %c0_i32_1 = arith.constant 0 : i32
    return %arg0, %c0_i32, %c0_i32_0 : i32, i32, i32
  }
  func.func @transform_7(%arg0: i32) -> (i32, i32) {
    %c0_i32 = arith.constant 0 : i32
    %c0_i32_0 = arith.constant 0 : i32
    return %c0_i32, %arg0 : i32, i32
  }
}

</mosaic_0001>

<llo_original>
// kernel: local_convolution_forward.1
$region0: #{local_convolution_forward.1}
  #allocation0 [shape = 'u32[]', space=smem, size = 0x4, offset = 0x4, fixed_abs, tag = 'smem constant byte address 0x4 - core index']
  #allocation1 [shape = 'u32[144,128]{1,0:T(1,128)}', space=vmem, size = 0x12000, scoped, tag = 'internal scratch']
  %s0 = inlined_call_operand.vmem [shape: f32[30,256], index: 0, kind: input, shape index: {}]
  %s1 = inlined_call_operand.vmem [shape: f32[2,128,48], index: 1, kind: input, shape index: {}]
  %s2 = inlined_call_operand.vmem [shape: f32[2,1,48], index: 2, kind: input, shape index: {}]
  %s3 = inlined_call_operand.vmem [shape: f32[2,1,48], index: 3, kind: input, shape index: {}]
  %s4 = inlined_call_operand.vmem [shape: f32[1,48], index: 4, kind: input, shape index: {}]
  %s5 = inlined_call_operand.vmem [shape: f32[2,48,128], index: 5, kind: input, shape index: {}]
  %s6 = inlined_call_operand.vmem [shape: f32[2,1,128], index: 6, kind: input, shape index: {}]
  %s7 = inlined_call_operand.vmem [shape: f32[30,256], index: 7, kind: output, shape index: {}]
  %s8 = sld [smem:[#allocation0]]
  $region133: #{local_convolution_forward.1} parent=0
    _
  %s10 = ssub.s32 1, %s8
  %s11 = scalar_select 0, %s10, %s8
  $region1: #{local_convolution_forward.1} parent=0
    #allocation2 [shape = 'u8[32768]{0}', space=vmem, size = 0x8000, scoped, tag = 'input window, operand 0']
    #allocation3 [shape = 'u8[32768]{0}', space=vmem, size = 0x8000, scoped, tag = 'output window, operand 0']
    loop: start=0, step=1, limit=4
    $region2: #{local_convolution_forward.1} parent=1 // loop_pre_header
      _
    $region3: #{local_convolution_forward.1} parent=1 // loop_header
      %s13 = sphi 0, %s17
      %p14 = scmp.ge.s32.totalorder %s13, 4
      %s23 = sphi 0, %s25
      %s26 = sphi 0, %s23
      %s27 = sphi 0, %s26
      %s43 = sphi 0, %s27
      %s49 = sphi 0, %s51
      %s52 = sphi 0, %s49
      %s53 = sphi 0, %s52
      %s69 = sphi 0, %s53
      %s75 = sphi 0, %s77
      %s78 = sphi 0, %s75
      %s79 = sphi 0, %s78
      %s95 = sphi 0, %s79
      %s101 = sphi 0, %s103
      %s104 = sphi 0, %s101
      %s105 = sphi 0, %s104
      %s121 = sphi 0, %s105
      %s125 = sphi 0, %s125
      %s127 = sphi 0, %s125
      %s128 = sphi 0, %s127
      %s142 = sphi 0, %s128
      %s148 = sphi 0, %s150
      %s151 = sphi 0, %s148
      %s152 = sphi 0, %s151
      %s168 = sphi 0, %s152
      %s174 = sphi 0, %s176
      %s177 = sphi 0, %s174
      %s178 = sphi 0, %s177
      %s194 = sphi 0, %s178
      %s200 = sphi 0, %s202
      %s203 = sphi 0, %s200
      %s204 = sphi 0, %s203
      %s220 = sphi 0, %s204
    $region4: #{local_convolution_forward.1} parent=1 // loop_header_branch
      %16 = sbr.rel (%p14) target = $region8
    $region5: #{local_convolution_forward.1} parent=1 // loop_body
      %s18 = ssub.s32 %s13, 1
      %s19 = ssub.s32 %s13, 2
      %s20 = sadd.s32 %s13, 1
      %s21 = ssub.s32 %s13, %s20
      %p22 = scmp.eq.s32.totalorder %s21, 0
      %s24 = sadd.s32 %s23, 1
      %s25 = scalar_select %p22, %s23, %s24
      %p28 = pneg %p22
      %p29 = scmp.eq.s32.totalorder %s13, 1
      %p30 = por %p28, %p29
      %p31 = scmp.ne.s32.totalorder %s23, %s26
      %p32 = scmp.eq.s32.totalorder %s13, 0
      %p33 = por %p31, %p32
      %p34 = scmp.ne.s32.totalorder %s23, %s26
      %p35 = scmp.eq.s32.totalorder %s18, 1
      %p36 = por %p34, %p35
      %p37 = scmp.ne.s32.totalorder %s26, %s27
      %p38 = scmp.eq.s32.totalorder %s18, 0
      %p39 = por %p37, %p38
      %p40 = scmp.ne.s32.totalorder %s26, %s27
      %p41 = scmp.eq.s32.totalorder %s19, 1
      %p42 = por %p40, %p41
      %p44 = scmp.ne.s32.totalorder %s27, %s43
      %p45 = scmp.eq.s32.totalorder %s19, 0
      %p46 = por %p44, %p45
      %s47 = ssub.s32 %s13, %s20
      %p48 = scmp.eq.s32.totalorder %s47, 0
      %s50 = sadd.s32 %s49, 1
      %s51 = scalar_select %p48, %s49, %s50
      %p54 = pneg %p48
      %p55 = scmp.eq.s32.totalorder %s13, 1
      %p56 = por %p54, %p55
      %p57 = scmp.ne.s32.totalorder %s49, %s52
      %p58 = scmp.eq.s32.totalorder %s13, 0
      %p59 = por %p57, %p58
      %p60 = scmp.ne.s32.totalorder %s49, %s52
      %p61 = scmp.eq.s32.totalorder %s18, 1
      %p62 = por %p60, %p61
      %p63 = scmp.ne.s32.totalorder %s52, %s53
      %p64 = scmp.eq.s32.totalorder %s18, 0
      %p65 = por %p63, %p64
      %p66 = scmp.ne.s32.totalorder %s52, %s53
      %p67 = scmp.eq.s32.totalorder %s19, 1
      %p68 = por %p66, %p67
      %p70 = scmp.ne.s32.totalorder %s53, %s69
      %p71 = scmp.eq.s32.totalorder %s19, 0
      %p72 = por %p70, %p71
      %s73 = ssub.s32 %s13, %s20
      %p74 = scmp.eq.s32.totalorder %s73, 0
      %s76 = sadd.s32 %s75, 1
      %s77 = scalar_select %p74, %s75, %s76
      %p80 = pneg %p74
      %p81 = scmp.eq.s32.totalorder %s13, 1
      %p82 = por %p80, %p81
      %p83 = scmp.ne.s32.totalorder %s75, %s78
      %p84 = scmp.eq.s32.totalorder %s13, 0
      %p85 = por %p83, %p84
      %p86 = scmp.ne.s32.totalorder %s75, %s78
      %p87 = scmp.eq.s32.totalorder %s18, 1
      %p88 = por %p86, %p87
      %p89 = scmp.ne.s32.totalorder %s78, %s79
      %p90 = scmp.eq.s32.totalorder %s18, 0
      %p91 = por %p89, %p90
      %p92 = scmp.ne.s32.totalorder %s78, %s79
      %p93 = scmp.eq.s32.totalorder %s19, 1
      %p94 = por %p92, %p93
      %p96 = scmp.ne.s32.totalorder %s79, %s95
      %p97 = scmp.eq.s32.totalorder %s19, 0
      %p98 = por %p96, %p97
      %s99 = ssub.s32 %s13, %s20
      %p100 = scmp.eq.s32.totalorder %s99, 0
      %s102 = sadd.s32 %s101, 1
      %s103 = scalar_select %p100, %s101, %s102
      %p106 = pneg %p100
      %p107 = scmp.eq.s32.totalorder %s13, 1
      %p108 = por %p106, %p107
      %p109 = scmp.ne.s32.totalorder %s101, %s104
      %p110 = scmp.eq.s32.totalorder %s13, 0
      %p111 = por %p109, %p110
      %p112 = scmp.ne.s32.totalorder %s101, %s104
      %p113 = scmp.eq.s32.totalorder %s18, 1
      %p114 = por %p112, %p113
      %p115 = scmp.ne.s32.totalorder %s104, %s105
      %p116 = scmp.eq.s32.totalorder %s18, 0
      %p117 = por %p115, %p116
      %p118 = scmp.ne.s32.totalorder %s104, %s105
      %p119 = scmp.eq.s32.totalorder %s19, 1
      %p120 = por %p118, %p119
      %p122 = scmp.ne.s32.totalorder %s105, %s121
      %p123 = scmp.eq.s32.totalorder %s19, 0
      %p124 = por %p122, %p123
      %s126 = sadd.s32 %s125, 1
      %p129 = scmp.eq.s32.totalorder %s13, 1
      %p130 = scmp.ne.s32.totalorder %s125, %s127
      %p131 = scmp.eq.s32.totalorder %s13, 0
      %p132 = por %p130, %p131
      %p133 = scmp.ne.s32.totalorder %s125, %s127
      %p134 = scmp.eq.s32.totalorder %s18, 1
      %p135 = por %p133, %p134
      %p136 = scmp.ne.s32.totalorder %s127, %s128
      %p137 = scmp.eq.s32.totalorder %s18, 0
      %p138 = por %p136, %p137
      %p139 = scmp.ne.s32.totalorder %s127, %s128
      %p140 = scmp.eq.s32.totalorder %s19, 1
      %p141 = por %p139, %p140
      %p143 = scmp.ne.s32.totalorder %s128, %s142
      %p144 = scmp.eq.s32.totalorder %s19, 0
      %p145 = por %p143, %p144
      %s146 = ssub.s32 %s13, %s20
      %p147 = scmp.eq.s32.totalorder %s146, 0
      %s149 = sadd.s32 %s148, 1
      %s150 = scalar_select %p147, %s148, %s149
      %p153 = pneg %p147
      %p154 = scmp.eq.s32.totalorder %s13, 1
      %p155 = por %p153, %p154
      %p156 = scmp.ne.s32.totalorder %s148, %s151
      %p157 = scmp.eq.s32.totalorder %s13, 0
      %p158 = por %p156, %p157
      %p159 = scmp.ne.s32.totalorder %s148, %s151
      %p160 = scmp.eq.s32.totalorder %s18, 1
      %p161 = por %p159, %p160
      %p162 = scmp.ne.s32.totalorder %s151, %s152
      %p163 = scmp.eq.s32.totalorder %s18, 0
      %p164 = por %p162, %p163
      %p165 = scmp.ne.s32.totalorder %s151, %s152
      %p166 = scmp.eq.s32.totalorder %s19, 1
      %p167 = por %p165, %p166
      %p169 = scmp.ne.s32.totalorder %s152, %s168
      %p170 = scmp.eq.s32.totalorder %s19, 0
      %p171 = por %p169, %p170
      %s172 = ssub.s32 %s13, %s20
      %p173 = scmp.eq.s32.totalorder %s172, 0
      %s175 = sadd.s32 %s174, 1
      %s176 = scalar_select %p173, %s174, %s175
      %p179 = pneg %p173
      %p180 = scmp.eq.s32.totalorder %s13, 1
      %p181 = por %p179, %p180
      %p182 = scmp.ne.s32.totalorder %s174, %s177
      %p183 = scmp.eq.s32.totalorder %s13, 0
      %p184 = por %p182, %p183
      %p185 = scmp.ne.s32.totalorder %s174, %s177
      %p186 = scmp.eq.s32.totalorder %s18, 1
      %p187 = por %p185, %p186
      %p188 = scmp.ne.s32.totalorder %s177, %s178
      %p189 = scmp.eq.s32.totalorder %s18, 0
      %p190 = por %p188, %p189
      %p191 = scmp.ne.s32.totalorder %s177, %s178
      %p192 = scmp.eq.s32.totalorder %s19, 1
      %p193 = por %p191, %p192
      %p195 = scmp.ne.s32.totalorder %s178, %s194
      %p196 = scmp.eq.s32.totalorder %s19, 0
      %p197 = por %p195, %p196
      %s198 = ssub.s32 %s13, %s20
      %p199 = scmp.eq.s32.totalorder %s198, 0
      %s201 = sadd.s32 %s200, 1
      %s202 = scalar_select %p199, %s200, %s201
      %p205 = pneg %p199
      %p206 = scmp.eq.s32.totalorder %s13, 1
      %p207 = por %p205, %p206
      %p208 = scmp.ne.s32.totalorder %s200, %s203
      %p209 = scmp.eq.s32.totalorder %s13, 0
      %p210 = por %p208, %p209
      %p211 = scmp.ne.s32.totalorder %s200, %s203
      %p212 = scmp.eq.s32.totalorder %s18, 1
      %p213 = por %p211, %p212
      %p214 = scmp.ne.s32.totalorder %s203, %s204
      %p215 = scmp.eq.s32.totalorder %s18, 0
      %p216 = por %p214, %p215
      %p217 = scmp.ne.s32.totalorder %s203, %s204
      %p218 = scmp.eq.s32.totalorder %s19, 1
      %p219 = por %p217, %p218
      %p221 = scmp.ne.s32.totalorder %s204, %s220
      %p222 = scmp.eq.s32.totalorder %s19, 0
      %p223 = por %p221, %p222
      %p224 = scmp.le.s32.totalorder 1, %s13
      %p225 = scmp.lt.s32.totalorder %s13, 3
      %p226 = pnand %p224, %p225
      %p227 = pneg %p226
      // Predicated region
      $region9: #{local_convolution_forward.1} parent=5 // pred_check
        _
      $region10: #{local_convolution_forward.1} parent=5 // pred_check_branch
        %229 = sbr.rel (%p226) target = $region12
      $region11: #{local_convolution_forward.1} parent=5 // pred_region
        %s230 = ssub.s32 %s13, 1
        // Predicated region
        $region13: #{local_convolution_forward.1} parent=11 // pred_check
          %p231 = pneg %p138
        $region14: #{local_convolution_forward.1} parent=11 // pred_check_branch
          %233 = sbr.rel (%p231) target = $region16
        $region15: #{local_convolution_forward.1} parent=11 // pred_region
          _
        $region16: #{local_convolution_forward.1} parent=11 // pred_fallthru
          _
      $region12: #{local_convolution_forward.1} parent=5 // pred_fallthru
        _
      %p234 = scmp.lt.s32.totalorder %s13, 2
      // Predicated region
      $region17: #{local_convolution_forward.1} parent=5 // pred_check
        %p235 = pneg %p234
      $region18: #{local_convolution_forward.1} parent=5 // pred_check_branch
        %237 = sbr.rel (%p235) target = $region20
      $region19: #{local_convolution_forward.1} parent=5 // pred_region
        // Predicated region
        $region21: #{local_convolution_forward.1} parent=19 // pred_check
          %p238 = pneg %p33
        $region22: #{local_convolution_forward.1} parent=19 // pred_check_branch
          %240 = sbr.rel (%p238) target = $region24
        $region23: #{local_convolution_forward.1} parent=19 // pred_region
          %s241 = sand.u32 %s23, 1
          %s242 = sand.u32 %s23, 1
          %s243 = smul.addr %s242, 32
          %s244 = scalar_lea.vmem [#allocation2], %s243
          %s245 = smul.addr %s13, 8
          %s246 = scalar_lea.vmem %s0, %s245
          // Predicated region
          $region25: #{local_convolution_forward.1} parent=23 // pred_check
            _
          $region26: #{local_convolution_forward.1} parent=23 // pred_check_branch
            %248 = sbr.rel (0) target = $region28
          $region27: #{local_convolution_forward.1} parent=23 // pred_region
            // Predicated region
            $region29: #{local_convolution_forward.1} parent=27 // pred_check
              _
            $region30: #{local_convolution_forward.1} parent=27 // pred_check_branch
              %250 = sbr.rel (0) target = $region32
            $region31: #{local_convolution_forward.1} parent=27 // pred_region
              // Predicated region
              $region44: #{local_convolution_forward.1} parent=31 // pred_check
                _
              $region45: #{local_convolution_forward.1} parent=31 // pred_check_branch
                %271 = sbr.rel (0) target = $region47
              $region46: #{local_convolution_forward.1} parent=31 // pred_region
                loop: start=0, step=1, limit=1
                $region48: #{local_convolution_forward.1} parent=46 // loop_pre_header
                  _
                $region49: #{local_convolution_forward.1} parent=46 // loop_header
                  %s273 = sphi 0, %s277
                  %p274 = scmp.ge.s32.totalorder %s273, 1
                  %s278 = sphi %s246, %s246
                  %s279 = sphi %s244, %s244
                $region50: #{local_convolution_forward.1} parent=46 // loop_header_branch
                  %276 = sbr.rel (%p274) target = $region54
                $region51: #{local_convolution_forward.1} parent=46 // loop_body
                  %v280 = vld [vmem:[%s278] sm:$0xff]
                  %281 = vst [vmem:[%s279] sm:$0xff] %v280
                  %v282 = vld [vmem:[%s278 + $0x10] sm:$0xff]
                  %283 = vst [vmem:[%s279 + $0x8] sm:$0xff] %v282
                  %v284 = vld [vmem:[%s278 + $0x20] sm:$0xff]
                  %285 = vst [vmem:[%s279 + $0x10] sm:$0xff] %v284
                  %v286 = vld [vmem:[%s278 + $0x30] sm:$0xff]
                  %287 = vst [vmem:[%s279 + $0x18] sm:$0xff] %v286
                $region52: #{local_convolution_forward.1} parent=46 // loop_footer
                  %s277 = sadd.s32 1, %s273
                $region53: #{local_convolution_forward.1} parent=46 // loop_footer_branch
                  %272 = sbr.rel target = $region49
                $region54: #{local_convolution_forward.1} parent=46 // loop_exit
                  _
              $region47: #{local_convolution_forward.1} parent=31 // pred_fallthru
                _
              // Predicated region
              $region55: #{local_convolution_forward.1} parent=31 // pred_check
                _
              $region56: #{local_convolution_forward.1} parent=31 // pred_check_branch
                %289 = sbr.rel target = $region58
              $region57: #{local_convolution_forward.1} parent=31 // pred_region
                _
              $region58: #{local_convolution_forward.1} parent=31 // pred_fallthru
                _
            $region32: #{local_convolution_forward.1} parent=27 // pred_fallthru
              _
            // Predicated region
            $region33: #{local_convolution_forward.1} parent=27 // pred_check
              _
            $region34: #{local_convolution_forward.1} parent=27 // pred_check_branch
              %252 = sbr.rel target = $region36
            $region35: #{local_convolution_forward.1} parent=27 // pred_region
              loop: start=0, step=1, limit=1
              $region37: #{local_convolution_forward.1} parent=35 // loop_pre_header
                _
              $region38: #{local_convolution_forward.1} parent=35 // loop_header
                %s255 = sphi 0, %s259
                %p256 = scmp.ge.s32.totalorder %s255, 1
                %s260 = sphi %s246, %s246
                %s261 = sphi %s244, %s244
              $region39: #{local_convolution_forward.1} parent=35 // loop_header_branch
                %258 = sbr.rel (%p256) target = $region43
              $region40: #{local_convolution_forward.1} parent=35 // loop_body
                %v262 = vld [vmem:[%s260] sm:$0xff]
                %263 = vst [vmem:[%s261] sm:$0xff] %v262
                %v264 = vld [vmem:[%s260 + $0x10] sm:$0xff]
                %265 = vst [vmem:[%s261 + $0x8] sm:$0xff] %v264
                %v266 = vld [vmem:[%s260 + $0x20] sm:$0xff]
                %267 = vst [vmem:[%s261 + $0x10] sm:$0xff] %v266
                %v268 = vld [vmem:[%s260 + $0x30] sm:$0xff]
                %269 = vst [vmem:[%s261 + $0x18] sm:$0xff] %v268
              $region41: #{local_convolution_forward.1} parent=35 // loop_footer
                %s259 = sadd.s32 1, %s255
              $region42: #{local_convolution_forward.1} parent=35 // loop_footer_branch
                %254 = sbr.rel target = $region38
              $region43: #{local_convolution_forward.1} parent=35 // loop_exit
                _
            $region36: #{local_convolution_forward.1} parent=27 // pred_fallthru
              _
          $region28: #{local_convolution_forward.1} parent=23 // pred_fallthru
            _
          %290 = vnop
        $region24: #{local_convolution_forward.1} parent=19 // pred_fallthru
          _
        // Predicated region
        $region59: #{local_convolution_forward.1} parent=19 // pred_check
          %p291 = pneg %p59
        $region60: #{local_convolution_forward.1} parent=19 // pred_check_branch
          %293 = sbr.rel (%p291) target = $region62
        $region61: #{local_convolution_forward.1} parent=19 // pred_region
          %p294 = scmp.lt.s32.totalorder %s13, 1
          %s295 = scalar_select %p294, %s13, 1
          %s296 = smul.addr %s295, 16
          %s297 = smul.addr %s296, 8
          %s298 = scalar_lea.vmem %s1, %s297
        $region62: #{local_convolution_forward.1} parent=19 // pred_fallthru
          _
        // Predicated region
        $region63: #{local_convolution_forward.1} parent=19 // pred_check
          %p299 = pneg %p85
        $region64: #{local_convolution_forward.1} parent=19 // pred_check_branch
          %301 = sbr.rel (%p299) target = $region66
        $region65: #{local_convolution_forward.1} parent=19 // pred_region
          %p302 = scmp.lt.s32.totalorder %s13, 1
          %s303 = scalar_select %p302, %s13, 1
          %s304 = scalar_lea.vmem %s2, %s303
        $region66: #{local_convolution_forward.1} parent=19 // pred_fallthru
          _
        // Predicated region
        $region67: #{local_convolution_forward.1} parent=19 // pred_check
          %p305 = pneg %p111
        $region68: #{local_convolution_forward.1} parent=19 // pred_check_branch
          %307 = sbr.rel (%p305) target = $region70
        $region69: #{local_convolution_forward.1} parent=19 // pred_region
          %p308 = scmp.lt.s32.totalorder %s13, 1
          %s309 = scalar_select %p308, %s13, 1
          %s310 = scalar_lea.vmem %s3, %s309
        $region70: #{local_convolution_forward.1} parent=19 // pred_fallthru
          _
        // Predicated region
        $region71: #{local_convolution_forward.1} parent=19 // pred_check
          %p311 = pneg %p158
        $region72: #{local_convolution_forward.1} parent=19 // pred_check_branch
          %313 = sbr.rel (%p311) target = $region74
        $region73: #{local_convolution_forward.1} parent=19 // pred_region
          %p314 = scmp.lt.s32.totalorder %s13, 1
          %s315 = scalar_select %p314, %s13, 1
          %s316 = smul.addr %s315, 6
          %s317 = smul.addr %s316, 8
          %s318 = scalar_lea.vmem %s5, %s317
        $region74: #{local_convolution_forward.1} parent=19 // pred_fallthru
          _
        // Predicated region
        $region75: #{local_convolution_forward.1} parent=19 // pred_check
          %p319 = pneg %p184
        $region76: #{local_convolution_forward.1} parent=19 // pred_check_branch
          %321 = sbr.rel (%p319) target = $region78
        $region77: #{local_convolution_forward.1} parent=19 // pred_region
          %p322 = scmp.lt.s32.totalorder %s13, 1
          %s323 = scalar_select %p322, %s13, 1
          %s324 = scalar_lea.vmem %s6, %s323
        $region78: #{local_convolution_forward.1} parent=19 // pred_fallthru
          _
      $region20: #{local_convolution_forward.1} parent=5 // pred_fallthru
        _
      %p325 = scmp.le.s32.totalorder 1, %s13
      %p326 = scmp.lt.s32.totalorder %s13, 3
      %p327 = pnand %p325, %p326
      %p328 = pneg %p327
      // Predicated region
      $region79: #{local_convolution_forward.1} parent=5 // pred_check
        _
      $region80: #{local_convolution_forward.1} parent=5 // pred_check_branch
        %330 = sbr.rel (%p327) target = $region82
      $region81: #{local_convolution_forward.1} parent=5 // pred_region
        %s331 = ssub.s32 %s13, 1
        %s332 = sand.u32 %s26, 1
        %s333 = sand.u32 %s26, 1
        %s334 = smul.addr %s333, 32
        %s335 = scalar_lea.vmem [#allocation2], %s334
        // Predicated region
        $region83: #{local_convolution_forward.1} parent=81 // pred_check
          %p336 = pneg %p39
        $region84: #{local_convolution_forward.1} parent=81 // pred_check_branch
          %338 = sbr.rel (%p336) target = $region86
        $region85: #{local_convolution_forward.1} parent=81 // pred_region
          _
        $region86: #{local_convolution_forward.1} parent=81 // pred_fallthru
          _
        %s339 = sand.u32 %s26, 1
        %s340 = sand.u32 %s26, 1
        %s341 = smul.addr %s340, 32
        %s342 = scalar_lea.vmem [#allocation2], %s341
        %p343 = pneg %p39
        %p344 = pneg %p36
        %p345 = scmp.lt.s32.totalorder %s18, 1
        %s346 = scalar_select %p345, %s18, 1
        %s347 = smul.addr %s346, 16
        %s348 = smul.addr %s347, 8
        %s349 = scalar_lea.vmem %s1, %s348
        %p350 = pneg %p65
        %p351 = pneg %p62
        %p352 = scmp.lt.s32.totalorder %s18, 1
        %s353 = scalar_select %p352, %s18, 1
        %s354 = scalar_lea.vmem %s2, %s353
        %p355 = pneg %p91
        %p356 = pneg %p88
        %p357 = scmp.lt.s32.totalorder %s18, 1
        %s358 = scalar_select %p357, %s18, 1
        %s359 = scalar_lea.vmem %s3, %s358
        %p360 = pneg %p117
        %p361 = pneg %p114
        %p362 = pneg %p138
        %p363 = pneg %p135
        %p364 = scmp.lt.s32.totalorder %s18, 1
        %s365 = scalar_select %p364, %s18, 1
        %s366 = smul.addr %s365, 6
        %s367 = smul.addr %s366, 8
        %s368 = scalar_lea.vmem %s5, %s367
        %p369 = pneg %p164
        %p370 = pneg %p161
        %p371 = scmp.lt.s32.totalorder %s18, 1
        %s372 = scalar_select %p371, %s18, 1
        %s373 = scalar_lea.vmem %s6, %s372
        %p374 = pneg %p190
        %p375 = pneg %p187
        %p376 = pneg %p216
        %p377 = pneg %p213
        %s378 = sand.u32 %s203, 1
        %s379 = sand.u32 %s203, 1
        %s380 = smul.addr %s379, 32
        %s381 = scalar_lea.vmem [#allocation3], %s380
        %p382 = scmp.lt.s32.totalorder %s18, 1
        %s383 = scalar_select %p382, %s18, 1
        %s384 = smul.addr %s383, 16
        %s385 = smul.addr %s384, 8
        %s386 = scalar_lea.vmem %s1, %s385
        %p387 = scmp.lt.s32.totalorder %s18, 1
        %s388 = scalar_select %p387, %s18, 1
        %s389 = scalar_lea.vmem %s2, %s388
        %p390 = scmp.lt.s32.totalorder %s18, 1
        %s391 = scalar_select %p390, %s18, 1
        %s392 = scalar_lea.vmem %s3, %s391
        %p393 = scmp.lt.s32.totalorder %s18, 1
        %s394 = scalar_select %p393, %s18, 1
        %s395 = smul.addr %s394, 6
        %s396 = smul.addr %s395, 8
        %s397 = scalar_lea.vmem %s5, %s396
        %p398 = scmp.lt.s32.totalorder %s18, 1
        %s399 = scalar_select %p398, %s18, 1
        %s400 = scalar_lea.vmem %s6, %s399
        %v401 = vld [vmem:[%s335] sm:$0xff]
        %v402 = vld [vmem:[%s335 + $0x8] sm:$0xff]
        %v403 = vld [vmem:[%s335 + $0x10] sm:$0xff]
        %v404 = vld [vmem:[%s335 + $0x18] sm:$0x3f]
        %v405 = vld [vmem:[%s386] sm:$0xff]
        %v406 = vld [vmem:[%s386 + $0x8] sm:$0xff]
        %v407 = vld [vmem:[%s386 + $0x10] sm:$0xff]
        %v408 = vld [vmem:[%s386 + $0x18] sm:$0xff]
        %v409 = vld [vmem:[%s386 + $0x20] sm:$0xff]
        %v410 = vld [vmem:[%s386 + $0x28] sm:$0xff]
        %v411 = vld [vmem:[%s386 + $0x30] sm:$0xff]
        %v412 = vld [vmem:[%s386 + $0x38] sm:$0xff]
        %v413 = vld [vmem:[%s386 + $0x40] sm:$0xff]
        %v414 = vld [vmem:[%s386 + $0x48] sm:$0xff]
        %v415 = vld [vmem:[%s386 + $0x50] sm:$0xff]
        %v416 = vld [vmem:[%s386 + $0x58] sm:$0xff]
        %v417 = vld [vmem:[%s386 + $0x60] sm:$0xff]
        %v418 = vld [vmem:[%s386 + $0x68] sm:$0xff]
        %v419 = vld [vmem:[%s386 + $0x70] sm:$0xff]
        %v420 = vld [vmem:[%s386 + $0x78] sm:$0xff]
        %421 = vmatprep.subr.mxu0 0.0
        %422 = vmatpush1.msra.mxu0 %v405
        %423 = vmatprep.subr.mxu0 0.0
        %424 = vmatpush1.msra.mxu0 %v406
        %425 = vmatprep.subr.mxu0 0.0
        %426 = vmatpush1.msra.mxu0 %v407
        %427 = vmatprep.subr.mxu0 0.0
        %428 = vmatpush1.msra.mxu0 %v408
        %429 = vmatprep.subr.mxu0 0.0
        %430 = vmatpush1.msra.mxu0 %v409
        %431 = vmatprep.subr.mxu0 0.0
        %432 = vmatpush1.msra.mxu0 %v410
        %433 = vmatprep.subr.mxu0 0.0
        %434 = vmatpush1.msra.mxu0 %v411
        %435 = vmatprep.subr.mxu0 0.0
        %436 = vmatpush1.msra.mxu0 %v412
        %437 = vmatprep.subr.mxu0 0.0
        %438 = vmatpush1.msra.mxu0 %v413
        %439 = vmatprep.subr.mxu0 0.0
        %440 = vmatpush1.msra.mxu0 %v414
        %441 = vmatprep.subr.mxu0 0.0
        %442 = vmatpush1.msra.mxu0 %v415
        %443 = vmatprep.subr.mxu0 0.0
        %444 = vmatpush1.msra.mxu0 %v416
        %445 = vmatprep.subr.mxu0 0.0
        %446 = vmatpush1.msra.mxu0 %v417
        %447 = vmatprep.subr.mxu0 0.0
        %448 = vmatpush1.msra.mxu0 %v418
        %449 = vmatprep.subr.mxu0 0.0
        %450 = vmatpush1.msra.mxu0 %v419
        %451 = vmatprep.subr.mxu0 0.0
        %452 = vmatpush1.msra.mxu0 %v420
        %453 = vmatprep.subr.mxu0 0.0
        %454 = vmatpush1.msra.mxu0 0.0
        %455 = vmatprep.subr.mxu0 0.0
        %456 = vmatpush1.msra.mxu0 0.0
        %457 = vmatprep.subr.mxu0 0.0
        %458 = vmatpush1.msra.mxu0 0.0
        %459 = vmatprep.subr.mxu0 0.0
        %460 = vmatpush1.msra.mxu0 0.0
        %461 = vmatprep.subr.mxu0 0.0
        %462 = vmatpush1.msra.mxu0 0.0
        %463 = vmatprep.subr.mxu0 0.0
        %464 = vmatpush1.msra.mxu0 0.0
        %465 = vmatprep.subr.mxu0 0.0
        %466 = vmatpush1.msra.mxu0 0.0
        %467 = vmatprep.subr.mxu0 0.0
        %468 = vmatpush1.msra.mxu0 0.0
        %469 = vmatprep.subr.mxu0 0.0
        %470 = vmatpush1.msra.mxu0 0.0
        %471 = vmatprep.subr.mxu0 0.0
        %472 = vmatpush1.msra.mxu0 0.0
        %473 = vmatprep.subr.mxu0 0.0
        %474 = vmatpush1.msra.mxu0 0.0
        %475 = vmatprep.subr.mxu0 0.0
        %476 = vmatpush1.msra.mxu0 0.0
        %477 = vmatprep.subr.mxu0 0.0
        %478 = vmatpush1.msra.mxu0 0.0
        %479 = vmatprep.subr.mxu0 0.0
        %480 = vmatpush1.msra.mxu0 0.0
        %481 = vmatprep.subr.mxu0 0.0
        %482 = vmatpush1.msra.mxu0 0.0
        %483 = vmatprep.subr.mxu0 0.0
        %484 = vmatpush1.msra.mxu0 0.0
        %485 = vmatprep.mubr.f32.mxu0 0.0
        %486 = vmatmul.mubr.f32.gmra.mrb[0].mxu0 %v401
        %v487 = vpop.f32.mrb[0].mxu0
        %v488 = vadd.f32 0.0, %v487
        %v489 = vpop.f32.mrb[0].mxu0
        %490 = vmatprep.mubr.f32.mxu0 0.0
        %491 = vmatmul.mubr.f32.gmra.mrb[0].mxu0 %v402
        %v492 = vpop.f32.mrb[0].mxu0
        %v493 = vadd.f32 0.0, %v492
        %v494 = vpop.f32.mrb[0].mxu0
        %495 = vmatprep.mubr.f32.mxu0 0.0
        %496 = vmatmul.mubr.f32.gmra.mrb[0].mxu0 %v403
        %v497 = vpop.f32.mrb[0].mxu0
        %v498 = vadd.f32 0.0, %v497
        %v499 = vpop.f32.mrb[0].mxu0
        %500 = vmatprep.mubr.f32.mxu0 0.0
        %501 = vmatmul.mubr.f32.gmra.mrb[0].mxu0 %v404
        %v502 = vpop.f32.mrb[0].mxu0
        %v503 = vadd.f32 0.0, %v502
        %v504 = vpop.f32.mrb[0].mxu0
        %505 = vdwg.mxu0
        %v506 = vld [vmem:[%s4] sm:$0x1]
        %vm507 = vcmask 392192
        %v508 = vsel %vm507, %v488, 0.0
        %v509 = vsel %vm507, %v493, 0.0
        %v510 = vadd.f32 %v508, %v509
        %v511 = vsel %vm507, %v498, 0.0
        %v512 = vadd.f32 %v510, %v511
        %vm513 = vcmask 390144
        %v514 = vsel %vm513, %v503, 0.0
        %v515 = vadd.f32 %v512, %v514
        %v516 = vrot.slane %v515, 4
        %v517 = vadd.f32 %v515, %v516
        %v518 = vrot.slane %v517, 2
        %v519 = vadd.f32 %v517, %v518
        %v520 = vrot.slane %v519, 1
        %v521 = vadd.f32 %v519, %v520
        %v522 = vmul.f32 %v521, %v506
        %v523 = vmul.f32 %v488, %v488
        %v524 = vmul.f32 %v493, %v493
        %v525 = vmul.f32 %v498, %v498
        %v526 = vmul.f32 %v503, %v503
        %v527 = vsel %vm507, %v523, 0.0
        %v528 = vsel %vm507, %v524, 0.0
        %v529 = vadd.f32 %v527, %v528
        %v530 = vsel %vm507, %v525, 0.0
        %v531 = vadd.f32 %v529, %v530
        %v532 = vsel %vm513, %v526, 0.0
        %v533 = vadd.f32 %v531, %v532
        %v534 = vrot.slane %v533, 4
        %v535 = vadd.f32 %v533, %v534
        %v536 = vrot.slane %v535, 2
        %v537 = vadd.f32 %v535, %v536
        %v538 = vrot.slane %v537, 1
        %v539 = vadd.f32 %v537, %v538
        %v540 = vmul.f32 %v539, %v506
        %v541 = vmul.f32 %v522, %v522
        %v542 = vsub.f32 %v540, %v541
        %v543 = vmax.f32 %v542, 0.0
        %v544 = vld [vmem:[%s389] sm:$0x1]
        %v545 = vadd.f32 %v543, 1e-05
        %v546 = vrsqrt.pop %v545
        %v547 = vmul.f32 %v544, %v546
        %v548 = vld [vmem:[%s392] sm:$0x1]
        %v549 = vmul.f32 %v522, %v547
        %v550 = vsub.f32 %v548, %v549
        %v552 = vlaneseq
        %v553 = vshrl.u32 %v552, 7
        %v554 = vsub.s32 0, %v553
        %v555 = vrot.slane %v547, %v554
        %v557 = vmul.f32 %v488, %v555
        %v558 = vmul.f32 %v493, %v555
        %v559 = vmul.f32 %v498, %v555
        %v560 = vmul.f32 %v503, %v555
        %v562 = vlaneseq
        %v563 = vshrl.u32 %v562, 7
        %v564 = vsub.s32 0, %v563
        %v565 = vrot.slane %v550, %v564
        %v567 = vadd.f32 %v557, %v565
        %v568 = vadd.f32 %v558, %v565
        %v569 = vadd.f32 %v559, %v565
        %v570 = vadd.f32 %v560, %v565
        %v571 = vmax.f32 %v567, 0.0
        %v572 = vmax.f32 %v568, 0.0
        %v573 = vmax.f32 %v569, 0.0
        %v574 = vmax.f32 %v570, 0.0
        %v575 = vld [vmem:[%s397] sm:$0xff]
        %v576 = vld [vmem:[%s397 + $0x8] sm:$0xff]
        %v577 = vld [vmem:[%s397 + $0x10] sm:$0xff]
        %v578 = vld [vmem:[%s397 + $0x18] sm:$0xff]
        %v579 = vld [vmem:[%s397 + $0x20] sm:$0xff]
        %v580 = vld [vmem:[%s397 + $0x28] sm:$0xff]
        %v581 = vld [vmem:[%s400] sm:$0x1]
        %v583 = vlaneseq
        %v584 = vshrl.u32 %v583, 7
        %v585 = vsub.s32 0, %v584
        %v586 = vrot.slane %v581, %v585
        %v589 = vsel %vm507, %v571, 0
        %v592 = vsel %vm507, %v572, 0
        %v595 = vsel %vm507, %v573, 0
        %v598 = vsel %vm507, %v574, 0
        %600 = vmatprep.subr.mxu0 0.0
        %601 = vmatpush1.msra.mxu0 %v575
        %602 = vmatprep.subr.mxu0 0.0
        %603 = vmatpush1.msra.mxu0 %v576
        %604 = vmatprep.subr.mxu0 0.0
        %605 = vmatpush1.msra.mxu0 %v577
        %606 = vmatprep.subr.mxu0 0.0
        %607 = vmatpush1.msra.mxu0 %v578
        %608 = vmatprep.subr.mxu0 0.0
        %609 = vmatpush1.msra.mxu0 %v579
        %610 = vmatprep.subr.mxu0 0.0
        %611 = vmatpush1.msra.mxu0 %v580
        %612 = vmatprep.subr.mxu0 0.0
        %613 = vmatpush1.msra.mxu0 0.0
        %614 = vmatprep.subr.mxu0 0.0
        %615 = vmatpush1.msra.mxu0 0.0
        %616 = vmatprep.subr.mxu0 0.0
        %617 = vmatpush1.msra.mxu0 0.0
        %618 = vmatprep.subr.mxu0 0.0
        %619 = vmatpush1.msra.mxu0 0.0
        %620 = vmatprep.subr.mxu0 0.0
        %621 = vmatpush1.msra.mxu0 0.0
        %622 = vmatprep.subr.mxu0 0.0
        %623 = vmatpush1.msra.mxu0 0.0
        %624 = vmatprep.subr.mxu0 0.0
        %625 = vmatpush1.msra.mxu0 0.0
        %626 = vmatprep.subr.mxu0 0.0
        %627 = vmatpush1.msra.mxu0 0.0
        %628 = vmatprep.subr.mxu0 0.0
        %629 = vmatpush1.msra.mxu0 0.0
        %630 = vmatprep.subr.mxu0 0.0
        %631 = vmatpush1.msra.mxu0 0.0
        %632 = vmatprep.subr.mxu0 0.0
        %633 = vmatpush1.msra.mxu0 0.0
        %634 = vmatprep.subr.mxu0 0.0
        %635 = vmatpush1.msra.mxu0 0.0
        %636 = vmatprep.subr.mxu0 0.0
        %637 = vmatpush1.msra.mxu0 0.0
        %638 = vmatprep.subr.mxu0 0.0
        %639 = vmatpush1.msra.mxu0 0.0
        %640 = vmatprep.subr.mxu0 0.0
        %641 = vmatpush1.msra.mxu0 0.0
        %642 = vmatprep.subr.mxu0 0.0
        %643 = vmatpush1.msra.mxu0 0.0
        %644 = vmatprep.subr.mxu0 0.0
        %645 = vmatpush1.msra.mxu0 0.0
        %646 = vmatprep.subr.mxu0 0.0
        %647 = vmatpush1.msra.mxu0 0.0
        %648 = vmatprep.subr.mxu0 0.0
        %649 = vmatpush1.msra.mxu0 0.0
        %650 = vmatprep.subr.mxu0 0.0
        %651 = vmatpush1.msra.mxu0 0.0
        %652 = vmatprep.subr.mxu0 0.0
        %653 = vmatpush1.msra.mxu0 0.0
        %654 = vmatprep.subr.mxu0 0.0
        %655 = vmatpush1.msra.mxu0 0.0
        %656 = vmatprep.subr.mxu0 0.0
        %657 = vmatpush1.msra.mxu0 0.0
        %658 = vmatprep.subr.mxu0 0.0
        %659 = vmatpush1.msra.mxu0 0.0
        %660 = vmatprep.subr.mxu0 0.0
        %661 = vmatpush1.msra.mxu0 0.0
        %662 = vmatprep.subr.mxu0 0.0
        %663 = vmatpush1.msra.mxu0 0.0
        %664 = vmatprep.mubr.f32.mxu0 0.0
        %665 = vmatmul.mubr.f32.gmra.mrb[0].mxu0 %v589
        %v666 = vpop.f32.mrb[0].mxu0
        %v667 = vadd.f32 %v586, %v666
        %v668 = vpop.f32.mrb[0].mxu0
        %669 = vmatprep.mubr.f32.mxu0 0.0
        %670 = vmatmul.mubr.f32.gmra.mrb[0].mxu0 %v592
        %v671 = vpop.f32.mrb[0].mxu0
        %v672 = vadd.f32 %v586, %v671
        %v673 = vpop.f32.mrb[0].mxu0
        %674 = vmatprep.mubr.f32.mxu0 0.0
        %675 = vmatmul.mubr.f32.gmra.mrb[0].mxu0 %v595
        %v676 = vpop.f32.mrb[0].mxu0
        %v677 = vadd.f32 %v586, %v676
        %v678 = vpop.f32.mrb[0].mxu0
        %679 = vmatprep.mubr.f32.mxu0 0.0
        %680 = vmatmul.mubr.f32.gmra.mrb[0].mxu0 %v598
        %v681 = vpop.f32.mrb[0].mxu0
        %v682 = vadd.f32 %v586, %v681
        %v683 = vpop.f32.mrb[0].mxu0
        %684 = vdwg.mxu0
        %v685 = vmax.f32 %v667, 0.0
        %v686 = vmax.f32 %v672, 0.0
        %v687 = vmax.f32 %v677, 0.0
        %v688 = vmax.f32 %v682, 0.0
        %689 = vst [vmem:[%s381] sm:$0xff] %v685
        %690 = vst [vmem:[%s381 + $0x8] sm:$0xff] %v686
        %691 = vst [vmem:[%s381 + $0x10] sm:$0xff] %v687
        %692 = vst [vmem:[%s381 + $0x18] sm:$0x3f] %v688
        %s693 = sand.u32 %s203, 1
        %s694 = sand.u32 %s203, 1
        %s695 = smul.addr %s694, 32
        %s696 = scalar_lea.vmem [#allocation3], %s695
        // Predicated region
        $region87: #{local_convolution_forward.1} parent=81 // pred_check
          %p697 = pneg %p213
        $region88: #{local_convolution_forward.1} parent=81 // pred_check_branch
          %699 = sbr.rel (%p697) target = $region90
        $region89: #{local_convolution_forward.1} parent=81 // pred_region
          %s700 = smul.addr %s18, 8
          %s701 = scalar_lea.vmem %s7, %s700
          // Predicated region
          $region91: #{local_convolution_forward.1} parent=89 // pred_check
            _
          $region92: #{local_convolution_forward.1} parent=89 // pred_check_branch
            %703 = sbr.rel (0) target = $region94
          $region93: #{local_convolution_forward.1} parent=89 // pred_region
            // Predicated region
            $region95: #{local_convolution_forward.1} parent=93 // pred_check
              _
            $region96: #{local_convolution_forward.1} parent=93 // pred_check_branch
              %705 = sbr.rel (0) target = $region98
            $region97: #{local_convolution_forward.1} parent=93 // pred_region
              // Predicated region
              $region110: #{local_convolution_forward.1} parent=97 // pred_check
                _
              $region111: #{local_convolution_forward.1} parent=97 // pred_check_branch
                %726 = sbr.rel (0) target = $region113
              $region112: #{local_convolution_forward.1} parent=97 // pred_region
                loop: start=0, step=1, limit=1
                $region114: #{local_convolution_forward.1} parent=112 // loop_pre_header
                  _
                $region115: #{local_convolution_forward.1} parent=112 // loop_header
                  %s728 = sphi 0, %s732
                  %p729 = scmp.ge.s32.totalorder %s728, 1
                  %s733 = sphi %s696, %s696
                  %s734 = sphi %s701, %s701
                $region116: #{local_convolution_forward.1} parent=112 // loop_header_branch
                  %731 = sbr.rel (%p729) target = $region120
                $region117: #{local_convolution_forward.1} parent=112 // loop_body
                  %v735 = vld [vmem:[%s733] sm:$0xff]
                  %736 = vst [vmem:[%s734] sm:$0xff] %v735
                  %v737 = vld [vmem:[%s733 + $0x8] sm:$0xff]
                  %738 = vst [vmem:[%s734 + $0x10] sm:$0xff] %v737
                  %v739 = vld [vmem:[%s733 + $0x10] sm:$0xff]
                  %740 = vst [vmem:[%s734 + $0x20] sm:$0xff] %v739
                  %v741 = vld [vmem:[%s733 + $0x18] sm:$0xff]
                  %742 = vst [vmem:[%s734 + $0x30] sm:$0xff] %v741
                $region118: #{local_convolution_forward.1} parent=112 // loop_footer
                  %s732 = sadd.s32 1, %s728
                $region119: #{local_convolution_forward.1} parent=112 // loop_footer_branch
                  %727 = sbr.rel target = $region115
                $region120: #{local_convolution_forward.1} parent=112 // loop_exit
                  _
              $region113: #{local_convolution_forward.1} parent=97 // pred_fallthru
                _
              // Predicated region
              $region121: #{local_convolution_forward.1} parent=97 // pred_check
                _
              $region122: #{local_convolution_forward.1} parent=97 // pred_check_branch
                %744 = sbr.rel target = $region124
              $region123: #{local_convolution_forward.1} parent=97 // pred_region
                _
              $region124: #{local_convolution_forward.1} parent=97 // pred_fallthru
                _
            $region98: #{local_convolution_forward.1} parent=93 // pred_fallthru
              _
            // Predicated region
            $region99: #{local_convolution_forward.1} parent=93 // pred_check
              _
            $region100: #{local_convolution_forward.1} parent=93 // pred_check_branch
              %707 = sbr.rel target = $region102
            $region101: #{local_convolution_forward.1} parent=93 // pred_region
              loop: start=0, step=1, limit=1
              $region103: #{local_convolution_forward.1} parent=101 // loop_pre_header
                _
              $region104: #{local_convolution_forward.1} parent=101 // loop_header
                %s710 = sphi 0, %s714
                %p711 = scmp.ge.s32.totalorder %s710, 1
                %s715 = sphi %s696, %s696
                %s716 = sphi %s701, %s701
              $region105: #{local_convolution_forward.1} parent=101 // loop_header_branch
                %713 = sbr.rel (%p711) target = $region109
              $region106: #{local_convolution_forward.1} parent=101 // loop_body
                %v717 = vld [vmem:[%s715] sm:$0xff]
                %718 = vst [vmem:[%s716] sm:$0xff] %v717
                %v719 = vld [vmem:[%s715 + $0x8] sm:$0xff]
                %720 = vst [vmem:[%s716 + $0x10] sm:$0xff] %v719
                %v721 = vld [vmem:[%s715 + $0x10] sm:$0xff]
                %722 = vst [vmem:[%s716 + $0x20] sm:$0xff] %v721
                %v723 = vld [vmem:[%s715 + $0x18] sm:$0xff]
                %724 = vst [vmem:[%s716 + $0x30] sm:$0xff] %v723
              $region107: #{local_convolution_forward.1} parent=101 // loop_footer
                %s714 = sadd.s32 1, %s710
              $region108: #{local_convolution_forward.1} parent=101 // loop_footer_branch
                %709 = sbr.rel target = $region104
              $region109: #{local_convolution_forward.1} parent=101 // loop_exit
                _
            $region102: #{local_convolution_forward.1} parent=93 // pred_fallthru
              _
          $region94: #{local_convolution_forward.1} parent=89 // pred_fallthru
            _
          %745 = vnop
        $region90: #{local_convolution_forward.1} parent=81 // pred_fallthru
          _
      $region82: #{local_convolution_forward.1} parent=5 // pred_fallthru
        _
      %p746 = scmp.le.s32.totalorder 2, %s13
      // Predicated region
      $region125: #{local_convolution_forward.1} parent=5 // pred_check
        %p747 = pneg %p746
      $region126: #{local_convolution_forward.1} parent=5 // pred_check_branch
        %749 = sbr.rel (%p747) target = $region128
      $region127: #{local_convolution_forward.1} parent=5 // pred_region
        %s750 = ssub.s32 %s13, 2
        // Predicated region
        $region129: #{local_convolution_forward.1} parent=127 // pred_check
          %p751 = pneg %p219
        $region130: #{local_convolution_forward.1} parent=127 // pred_check_branch
          %753 = sbr.rel (%p751) target = $region132
        $region131: #{local_convolution_forward.1} parent=127 // pred_region
          %s754 = sand.u32 %s204, 1
          %s755 = sand.u32 %s204, 1
          %s756 = smul.addr %s755, 32
          %s757 = scalar_lea.vmem [#allocation3], %s756
        $region132: #{local_convolution_forward.1} parent=127 // pred_fallthru
          _
      $region128: #{local_convolution_forward.1} parent=5 // pred_fallthru
        _
    $region6: #{local_convolution_forward.1} parent=1 // loop_footer
      %s17 = sadd.s32 1, %s13
    $region7: #{local_convolution_forward.1} parent=1 // loop_footer_branch
      %12 = sbr.rel target = $region3
    $region8: #{local_convolution_forward.1} parent=1 // loop_exit
      _

</llo_original>
